<compile_context>
chip_gen: v6e
topology: v6e:2x2x1
jax: 0.10.0
libtpu: 0.0.40
codegen_flags: <defaults>
</compile_context>

<pallas_src>
import functools

import jax
import jax.numpy as jnp
from jax.experimental import pallas as pl
from jax.experimental.pallas import tpu as pltpu


def _round_up(x, m):
    return ((x + m - 1) // m) * m


def fuse_params(w_trend, b_trend, w_head, b_head,
                *, d_model, patch_num, patch_len, target_window):
    """One-time algebraic fusion of Linear_Trend + permute + flatten + head Linear.

    Flatten order after permute(0,1,3,2) is f = d*P + p; z row-flatten order is k = p*L + l:
        W_fused[p*L + l, t] = sum_d W_trend[d, l] * W_head[t, d*P + p]
        b_fused[t]          = b_head[t] + sum_{p,d} b_trend[d] * W_head[t, d*P + p]
    Call once at parameter-load time (not on the forward hot path).
    Returns (w_fused bf16 (K,T), b_fused f32 (1,T)).
    """
    P, L, D, T = patch_num, patch_len, d_model, target_window
    wt = w_trend.astype(jnp.float32).T                                       # (L, D)
    wh3 = w_head.astype(jnp.float32).reshape(T, D, P).transpose(2, 1, 0)     # (P, D, T)
    w_fused = jnp.einsum('ld,pdt->plt', wt, wh3).reshape(P * L, T)           # (K, T)
    b_fused = (b_head.astype(jnp.float32)
               + jnp.einsum('d,pdt->t', b_trend.astype(jnp.float32), wh3)
               ).reshape(1, T)                                               # (1, T)
    return w_fused.astype(jnp.bfloat16), b_fused


def _fused_kernel(z_ref, w_ref, b_ref, out_ref):
    # z_ref  : (tm, K)  bf16   — flattened (patch_num*patch_len) activation rows
    # w_ref  : (K, T)   bf16   — fused weight, VMEM-resident across the grid
    # b_ref  : (1, T)   f32    — fused bias, VMEM-resident
    # out_ref: (tm, T)  f32
    out_ref[...] = (
        jnp.dot(z_ref[...], w_ref[...], preferred_element_type=jnp.float32)
        + b_ref[...]
    )


@functools.partial(jax.jit, static_argnames=("tile_m",))
def patch_linear_without_patch(z, w_fused, b_fused, *, tile_m=4096):
    """z: (B, V, patch_num, patch_len) -> (B, V, target_window)."""
    B, V, P, L = z.shape
    K = P * L
    T = b_fused.shape[-1]
    rows = B * V

    # bf16 activation stream (halves the dominant HBM read); accumulate in f32.
    z2 = z.reshape(rows, K).astype(jnp.bfloat16)

    # Row tile: multiple of 8, <= tile_m, and (when rows allow) at least two grid
    # steps so the "parallel" row axis can shard across both TensorCores on v7x.
    tm = min(tile_m, max(8, _round_up(pl.cdiv(rows, 2), 8)))
    tm = min(tm, _round_up(rows, 8))
    grid = (pl.cdiv(rows, tm),)   # no wrapper-side padding; ragged last block is fine

    # Explicit VMEM budget only when a very large tile would exceed v5e's 16 MiB
    # scoped default (double-buffered bf16 input + f32 output + resident weights).
    footprint = 2 * tm * K * 2 + 2 * tm * T * 4 + K * T * 2 + T * 4
    cp_kwargs = dict(dimension_semantics=("parallel",))
    if footprint > 12 * 1024 * 1024:
        cp_kwargs["vmem_limit_bytes"] = min(2 * footprint, 64 * 1024 * 1024)

    out = pl.pallas_call(
        _fused_kernel,
        out_shape=jax.ShapeDtypeStruct((rows, T), jnp.float32),
        grid_spec=pltpu.PrefetchScalarGridSpec(
            num_scalar_prefetch=0,
            grid=grid,
            in_specs=[
                pl.BlockSpec((tm, K), lambda i: (i, 0)),
                # Constant index maps -> weight/bias stay resident in VMEM across the grid.
                # TODO(synk): pipeline_mode=pl.Buffered(1) would drop their second buffer
                # (~32 KiB); omitted to keep lowering maximally portable.
                pl.BlockSpec((K, T), lambda i: (0, 0)),
                pl.BlockSpec((1, T), lambda i: (0, 0)),
            ],
            out_specs=pl.BlockSpec((tm, T), lambda i: (i, 0)),
        ),
        compiler_params=pltpu.CompilerParams(**cp_kwargs),
    )(z2, w_fused, b_fused)

    return out.reshape(B, V, T)


if __name__ == "__main__":
    # Small shapes consistent with the module's __init__.
    B, c_in = 2, 4                     # batch, n_vars
    patch_len, stride = 16, 8
    patch_num = 8                      # int((context_window - patch_len)/stride + 1)
    context_window = patch_len + (patch_num - 1) * stride   # 72
    d_model = 32
    target_window = 24
    head_nf = d_model * patch_num      # 256

    key = jax.random.PRNGKey(0)
    k1, k2, k3, k4, k5 = jax.random.split(key, 5)

    # Deterministic parameter init (PyTorch nn.Linear-style uniform bounds).
    lim_t = 1.0 / (patch_len ** 0.5)
    w_trend = jax.random.uniform(k1, (d_model, patch_len), jnp.float32, -lim_t, lim_t)
    b_trend = jax.random.uniform(k2, (d_model,), jnp.float32, -lim_t, lim_t)
    lim_h = 1.0 / (head_nf ** 0.5)
    w_head = jax.random.uniform(k3, (target_window, head_nf), jnp.float32, -lim_h, lim_h)
    b_head = jax.random.uniform(k4, (target_window,), jnp.float32, -lim_h, lim_h)

    # Input: (B, n_vars, patch_num, patch_len)
    z = jax.random.normal(k5, (B, c_in, patch_num, patch_len), jnp.float32)

    # One-time parameter fusion (parameter-load time).
    w_fused, b_fused = fuse_params(
        w_trend, b_trend, w_head, b_head,
        d_model=d_model, patch_num=patch_num, patch_len=patch_len,
        target_window=target_window)

    out = patch_linear_without_patch(z, w_fused, b_fused)
    out = jax.block_until_ready(out)

    # Pure-JAX f32 reference mirroring the PyTorch forward.
    h_ref = jnp.einsum('bvpl,dl->bvpd', z, w_trend) + b_trend             # Linear_Trend
    h_ref = jnp.transpose(h_ref, (0, 1, 3, 2)).reshape(B, c_in, head_nf)  # permute + flatten
    ref = jnp.einsum('bvf,tf->bvt', h_ref, w_head) + b_head               # head Linear

    assert out.shape == (B, c_in, target_window)
    # bf16 activation/weight stream -> loosened tolerance vs. the pure-f32 reference.
    assert jnp.allclose(out, ref, atol=2e-2, rtol=2e-2), float(jnp.max(jnp.abs(out - ref)))
    print("KERNEL_OK")
</pallas_src>

<mosaic_0001>
module attributes {stable_mosaic.version = 11 : i64} {
  func.func @_fused_kernel(%arg0: i32, %arg1: memref<8x128xbf16, #tpu.memory_space<vmem>>, %arg2: memref<128x24xbf16, #tpu.memory_space<vmem>>, %arg3: memref<1x24xf32, #tpu.memory_space<vmem>>, %arg4: memref<8x24xf32, #tpu.memory_space<vmem>>) attributes {dimension_semantics = [#tpu.dimension_semantics<parallel>], iteration_bounds = array<i64: 1>, scalar_prefetch = 0 : i64, scratch_operands = 0 : i64, tpu.core_type = #tpu.core_type<tc>, window_params = [{transform_indices = @transform_0, window_bounds = array<i64: 8, 128>}, {pipeline_mode = #tpu.pipeline_mode<synchronous>, transform_indices = @transform_1, window_bounds = array<i64: 128, 24>}, {pipeline_mode = #tpu.pipeline_mode<synchronous>, transform_indices = @transform_2, window_bounds = array<i64: 1, 24>}, {transform_indices = @transform_3, window_bounds = array<i64: 8, 24>}]} {
    %c0 = arith.constant 0 : index
    %c0_0 = arith.constant 0 : index
    %0 = vector.load %arg1[%c0, %c0_0] : memref<8x128xbf16, #tpu.memory_space<vmem>>, vector<8x128xbf16>
    %c0_1 = arith.constant 0 : index
    %c0_2 = arith.constant 0 : index
    %1 = vector.load %arg2[%c0_1, %c0_2] : memref<128x24xbf16, #tpu.memory_space<vmem>>, vector<128x24xbf16>
    %cst = arith.constant dense<0.000000e+00> : vector<8x24xf32>
    %2 = tpu.matmul %0, %1, %cst {dimension_numbers = #tpu.dot_dimension_numbers<[1], [0], [0], [1], [0, 0, 1, 1], [], []>} : vector<8x128xbf16>, vector<128x24xbf16>, vector<8x24xf32> -> vector<8x24xf32>
    %c0_3 = arith.constant 0 : index
    %c0_4 = arith.constant 0 : index
    %3 = vector.load %arg3[%c0_3, %c0_4] : memref<1x24xf32, #tpu.memory_space<vmem>>, vector<1x24xf32>
    %4 = vector.broadcast %3 : vector<1x24xf32> to vector<8x24xf32>
    %5 = arith.addf %2, %4 : vector<8x24xf32>
    %c0_5 = arith.constant 0 : index
    %c0_6 = arith.constant 0 : index
    %6 = vector.load %arg4[%c0_5, %c0_6] : memref<8x24xf32, #tpu.memory_space<vmem>>, vector<8x24xf32>
    tpu.vector_store %arg4[%c0_5, %c0_6], %5 {strides = array<i32>} : memref<8x24xf32, #tpu.memory_space<vmem>>, vector<8x24xf32>,
    return
  }
  func.func @transform_0(%arg0: i32) -> (i32, i32) {
    %c0_i32 = arith.constant 0 : i32
    %c0_i32_0 = arith.constant 0 : i32
    return %arg0, %c0_i32 : i32, i32
  }
  func.func @transform_1(%arg0: i32) -> (i32, i32) {
    %c0_i32 = arith.constant 0 : i32
    %c0_i32_0 = arith.constant 0 : i32
    %c0_i32_1 = arith.constant 0 : i32
    return %c0_i32, %c0_i32_0 : i32, i32
  }
  func.func @transform_2(%arg0: i32) -> (i32, i32) {
    %c0_i32 = arith.constant 0 : i32
    %c0_i32_0 = arith.constant 0 : i32
    %c0_i32_1 = arith.constant 0 : i32
    return %c0_i32, %c0_i32_0 : i32, i32
  }
  func.func @transform_3(%arg0: i32) -> (i32, i32) {
    %c0_i32 = arith.constant 0 : i32
    %c0_i32_0 = arith.constant 0 : i32
    return %arg0, %c0_i32 : i32, i32
  }
}

</mosaic_0001>

<llo_original>
// kernel: patch_linear_without_patch.1
$region0: #{patch_linear_without_patch.1}
  #allocation0 [shape = 'u32[]', space=smem, size = 0x4, offset = 0x4, fixed_abs, tag = 'smem constant byte address 0x4 - core index']
  #allocation1 [shape = 'u32[144,128]{1,0:T(1,128)}', space=vmem, size = 0x12000, scoped, tag = 'internal scratch']
  %s0 = inlined_call_operand.vmem [shape: bf16[8,128], index: 0, kind: input, shape index: {}]
  %s1 = inlined_call_operand.vmem [shape: bf16[128,24], index: 1, kind: input, shape index: {}]
  %s2 = inlined_call_operand.vmem [shape: f32[1,24], index: 2, kind: input, shape index: {}]
  %s3 = inlined_call_operand.hbm [shape: f32[8,24], index: 3, kind: output, shape index: {}]
  %s4 = sld [smem:[#allocation0]]
  $region22: #{patch_linear_without_patch.1} parent=0
    _
  %s6 = ssub.s32 1, %s4
  %s7 = scalar_select 0, %s6, %s4
  $region1: #{patch_linear_without_patch.1} parent=0
    #allocation2 [shape = 'u8[4096]{0}', space=vmem, size = 0x1000, scoped, tag = 'output window, operand 0, single buffered']
    #allocation3 [shape = 's32[1]{0}', space=sflag, size = 0x4, scoped, tag = 'scoped memory for patch_linear_without_patch.1']
    %8 = vsyncpa [#allocation3], 0
    // Predicated region
    $region2: #{patch_linear_without_patch.1} parent=1 // pred_check
      _
    $region3: #{patch_linear_without_patch.1} parent=1 // pred_check_branch
      %10 = sbr.rel (0) target = $region5
    $region4: #{patch_linear_without_patch.1} parent=1 // pred_region
      _
    $region5: #{patch_linear_without_patch.1} parent=1 // pred_fallthru
      _
    // Predicated region
    $region6: #{patch_linear_without_patch.1} parent=1 // pred_check
      _
    $region7: #{patch_linear_without_patch.1} parent=1 // pred_check_branch
      %12 = sbr.rel (0) target = $region9
    $region8: #{patch_linear_without_patch.1} parent=1 // pred_region
      _
    $region9: #{patch_linear_without_patch.1} parent=1 // pred_fallthru
      _
    // Predicated region
    $region10: #{patch_linear_without_patch.1} parent=1 // pred_check
      _
    $region11: #{patch_linear_without_patch.1} parent=1 // pred_check_branch
      %14 = sbr.rel (0) target = $region13
    $region12: #{patch_linear_without_patch.1} parent=1 // pred_region
      _
    $region13: #{patch_linear_without_patch.1} parent=1 // pred_fallthru
      _
    %v16 = vld [vmem:[%s0] sm:$0xf]
    %v17 = vld [vmem:[%s1] sm:$0xf]
    %v18 = vld [vmem:[%s1 + $0x4] sm:$0xf]
    %v19 = vld [vmem:[%s1 + $0x8] sm:$0xf]
    %v20 = vld [vmem:[%s1 + $0xc] sm:$0xf]
    %v21 = vld [vmem:[%s1 + $0x10] sm:$0xf]
    %v22 = vld [vmem:[%s1 + $0x14] sm:$0xf]
    %v23 = vld [vmem:[%s1 + $0x18] sm:$0xf]
    %v24 = vld [vmem:[%s1 + $0x1c] sm:$0xf]
    %v25 = vld [vmem:[%s1 + $0x20] sm:$0xf]
    %v26 = vld [vmem:[%s1 + $0x24] sm:$0xf]
    %v27 = vld [vmem:[%s1 + $0x28] sm:$0xf]
    %v28 = vld [vmem:[%s1 + $0x2c] sm:$0xf]
    %v29 = vld [vmem:[%s1 + $0x30] sm:$0xf]
    %v30 = vld [vmem:[%s1 + $0x34] sm:$0xf]
    %v31 = vld [vmem:[%s1 + $0x38] sm:$0xf]
    %v32 = vld [vmem:[%s1 + $0x3c] sm:$0xf]
    %v33 = vld [vmem:[%s2] sm:$0x1]
    %v35 = vlaneseq
    %v36 = vshrl.u32 %v35, 7
    %v37 = vsub.s32 0, %v36
    %v38 = vrot.slane %v33, %v37
    %v56 = vunpack.c.l.b16 %v17
    %v57 = vunpack.c.l.b16 %v18
    %v58 = vunpack.c.l.b16 %v19
    %v59 = vunpack.c.l.b16 %v20
    %v60 = vunpack.c.l.b16 %v21
    %v61 = vunpack.c.l.b16 %v22
    %v62 = vunpack.c.l.b16 %v23
    %v63 = vunpack.c.l.b16 %v24
    %v64 = vunpack.c.l.b16 %v25
    %v65 = vunpack.c.l.b16 %v26
    %v66 = vunpack.c.l.b16 %v27
    %v67 = vunpack.c.l.b16 %v28
    %v68 = vunpack.c.l.b16 %v29
    %v69 = vunpack.c.l.b16 %v30
    %v70 = vunpack.c.l.b16 %v31
    %v71 = vunpack.c.l.b16 %v32
    %v72 = vpack.c.b16 %v57, %v56
    %v73 = vpack.c.b16 %v59, %v58
    %v74 = vpack.c.b16 %v61, %v60
    %v75 = vpack.c.b16 %v63, %v62
    %v76 = vpack.c.b16 %v65, %v64
    %v77 = vpack.c.b16 %v67, %v66
    %v78 = vpack.c.b16 %v69, %v68
    %v79 = vpack.c.b16 %v71, %v70
    %88 = vmatprep.subr.bf16.mxu0 0
    %89 = vmatpush1.bf16.msra.mxu0 %v79
    %90 = vmatprep.subr.bf16.mxu0 0
    %91 = vmatpush1.bf16.msra.mxu0 %v78
    %92 = vmatprep.subr.bf16.mxu0 0
    %93 = vmatpush1.bf16.msra.mxu0 %v77
    %94 = vmatprep.subr.bf16.mxu0 0
    %95 = vmatpush1.bf16.msra.mxu0 %v76
    %96 = vmatprep.subr.bf16.mxu0 0
    %97 = vmatpush1.bf16.msra.mxu0 %v75
    %98 = vmatprep.subr.bf16.mxu0 0
    %99 = vmatpush1.bf16.msra.mxu0 %v74
    %100 = vmatprep.subr.bf16.mxu0 0
    %101 = vmatpush1.bf16.msra.mxu0 %v73
    %102 = vmatprep.subr.bf16.mxu0 0
    %103 = vmatpush1.bf16.msra.mxu0 %v72
    %104 = vmatprep.subr.bf16.mxu0 0
    %105 = vmatpush2.bf16.msra.mxu0 0
    %106 = vmatprep.subr.bf16.mxu0 0
    %107 = vmatpush2.bf16.msra.mxu0 0
    %108 = vmatprep.subr.bf16.mxu0 0
    %109 = vmatpush2.bf16.msra.mxu0 0
    %110 = vmatprep.subr.bf16.mxu0 0
    %111 = vmatpush2.bf16.msra.mxu0 0
    %112 = vmatprep.subr.bf16.mxu0 0
    %113 = vmatpush2.bf16.msra.mxu0 0
    %114 = vmatprep.subr.bf16.mxu0 0
    %115 = vmatpush2.bf16.msra.mxu0 0
    %116 = vmatprep.subr.bf16.mxu0 0
    %117 = vmatpush2.bf16.msra.mxu0 0
    %118 = vmatprep.subr.bf16.mxu0 0
    %119 = vmatpush2.bf16.msra.mxu0 0
    %120 = vmatprep.mubr.bf16.mxu0 0
    %121 = vmatmul.mubr.bf16.gmra.mxu0 %v16
    %v122 = vpop.f32.mrf.mxu0
    %v123 = vadd.f32 %v38, %v122
    %v124 = vpop.f32.mrf.mxu0
    %v125 = vpop.f32.mrf.mxu0
    %v126 = vpop.f32.mrf.mxu0
    %127 = vdwg.mxu0
    %vm128 = vcmask 195584
    %129 = vst.msk [vmem:[#allocation2] sm:$0xff] %vm128, %v123
    // Predicated region
    $region14: #{patch_linear_without_patch.1} parent=1 // pred_check
      _
    $region15: #{patch_linear_without_patch.1} parent=1 // pred_check_branch
      %131 = sbr.rel (0) target = $region17
    $region16: #{patch_linear_without_patch.1} parent=1 // pred_region
      %s133 = ssub.s32 128, 128
      %134 = vsyncadd [#allocation3], %s133
      %s136 = sshll.u32 [#allocation2], 4
      %s137 = int_to_ptr.vmem [resolvable:$true] %s136
      %139 = dma.vmem_to_hbm [thread:$0]  %s137, 128, %s3, [#allocation3]
    $region17: #{patch_linear_without_patch.1} parent=1 // pred_fallthru
      _
    // Predicated region
    $region18: #{patch_linear_without_patch.1} parent=1 // pred_check
      _
    $region19: #{patch_linear_without_patch.1} parent=1 // pred_check_branch
      %141 = sbr.rel (0) target = $region21
    $region20: #{patch_linear_without_patch.1} parent=1 // pred_region
      %142 = dma.done [#allocation3], 128
    $region21: #{patch_linear_without_patch.1} parent=1 // pred_fallthru
      _
    %143 = vsyncpa [#allocation3], 1

</llo_original>
